<compile_context>
chip_gen: v6e
topology: v6e:2x2x1
jax: 0.10.0
libtpu: 0.0.40
codegen_flags: <defaults>
</compile_context>

<pallas_src>
import jax
import jax.numpy as jnp
from jax import lax
from jax.experimental import pallas as pl
from jax.experimental.pallas import tpu as pltpu


# ----------------------------------------------------------------------------
# dance = concat([smpl_trans, smpl_poses], axis=-1)
# Perf review: pure copy; XLA concat fusion hits the HBM roofline and avoids the
# lane-3-misaligned Pallas store path entirely.
# NOTE: D = 3 + 132 = 135 pads to 256 lanes in VMEM/vregs downstream; padding the
# feature dim to a 128-multiple would change forward semantics, so it is only
# accounted for in the VMEM budgeting below.
# ----------------------------------------------------------------------------
def make_dance(smpl_trans, smpl_poses):
    return jnp.concatenate([smpl_trans, smpl_poses], axis=3)


# ----------------------------------------------------------------------------
# Causal mask (0 on/below diagonal, -inf above) — processor.get_mask(sz).
# sz is tiny & static -> build at trace time.
# ----------------------------------------------------------------------------
def get_mask(sz):
    row = lax.broadcasted_iota(jnp.int32, (sz, sz), 0)
    col = lax.broadcasted_iota(jnp.int32, (sz, sz), 1)
    return jnp.where(col <= row, 0.0, -jnp.inf).astype(jnp.float32)


# ----------------------------------------------------------------------------
# Counter-based PRNG helper (pure int32 VPU ops; no stateful pltpu.prng_* so it
# lowers on Mosaic and in interpret mode).
# ----------------------------------------------------------------------------
def _srl(x, k):
    # logical right shift for int32: arithmetic shift then mask off sign bits
    return (x >> k) & ((1 << (32 - k)) - 1)


# ----------------------------------------------------------------------------
# Scheduled-sampling mixer kernel.
#   gt_ref, pred_ref, out_ref : (tb, T, D) blocks
#   semantics (as in the PyTorch module):
#     shifted = concat([gt[:, :1, :], pred], axis=1)   (pred already zero-padded
#                                                       to T steps in the wrapper)
#     mask    = rand <= p            (counter-based hash, integer-domain compare)
#     out     = where(mask | t==0, gt, shifted)        (t==0: shifted == gt anyway)
# ----------------------------------------------------------------------------
def _make_dance_src_kernel(thr, seed):
    # thr / seed are Python-static per call -> closure constants (no SMEM operands)
    def kernel(gt_ref, pred_ref, out_ref):
        tb, T, D = gt_ref.shape

        # small (1, T, D) inner-offset pattern + (tb, 1, 1) global-row ramp;
        # broadcast-add gives a unique 32-bit counter per element of this call.
        tt = lax.broadcasted_iota(jnp.int32, (1, T, D), 1)
        ff = lax.broadcasted_iota(jnp.int32, (1, T, D), 2)
        inner = tt * D + ff
        grow = (pl.program_id(0) * tb
                + lax.broadcasted_iota(jnp.int32, (tb, 1, 1), 0))
        idx = grow * (T * D) + inner

        # golden-ratio salt + one xor-shift-mul mixing round (plenty of avalanche
        # for a Bernoulli compare), take 31 bits.
        x = idx * (-1640531535) + seed          # 0x9E3779B1
        x = x ^ _srl(x, 16)
        x = x * (-2048144789)                   # 0x85EBCA6B
        x = x ^ _srl(x, 15)
        bits = x & 0x7FFFFFFF

        keep = (bits <= thr) | (tt == 0)        # t == 0 always comes from gt
        out_ref[...] = jnp.where(keep, gt_ref[...], pred_ref[...])

    return kernel


def _pick_row_tile(total, max_tile, per_row_bytes, n_bufs, min_tile=1,
                   vmem_budget_bytes=12 << 20):
    """Row-tile size: fit double-buffered operands in the smallest default scoped
    VMEM (16 MiB on v5e; v6e/v7x have headroom -> raise vmem_budget_bytes/max_tile
    for production sizes), and keep >= 2 grid steps on the 'parallel' axis so a
    v7x chip feeds both TensorCores."""
    cap = max(min_tile, vmem_budget_bytes // (2 * n_bufs * per_row_bytes))
    tile = max(min_tile, min(max_tile, cap, total))
    if pl.cdiv(total, tile) < 2 and total >= 2 * min_tile:
        half = pl.cdiv(total, 2)
        tile = max(min_tile, min(tile, pl.cdiv(half, min_tile) * min_tile))
    return tile


def get_dance_src(dance_gt, dance_pred, cur_epoch, tol_epoch, seed=0,
                  max_tile_bn=256, vmem_budget_bytes=12 << 20):
    # p schedule exactly as in the PyTorch module
    if cur_epoch <= 300:
        p = 1.0
    else:
        p = 1.0 - (cur_epoch - 300) / (tol_epoch - 300) * 0.7

    # ---- short circuits (perf review): skip the launch in the trivial regimes ----
    if p >= 1.0:                 # first 300 epochs: every element keeps gt
        return dance_gt
    if p <= 0.0:                 # fully teacher-free: always the shifted tensor
        return jnp.concatenate([dance_gt[:, :, :1, :], dance_pred], axis=2)

    thr = int(p * (1 << 31))     # 31-bit Bernoulli threshold, baked as a constant

    b, n, T, D = dance_gt.shape
    bn = b * n
    gt2 = dance_gt.reshape(bn, T, D)
    # zero-pad pred with one leading time step; the kernel forces `keep` at t == 0,
    # so the pad value is never observed (shifted[:, 0] == gt[:, 0] anyway). This
    # turns the kernel body into a single full-tile where + full-tile store.
    pr2 = jnp.pad(dance_pred.reshape(bn, T - 1, D), ((0, 0), (1, 0), (0, 0)))

    # VMEM budget uses the lane-padded feature width (135 -> 256).
    lanes = max(128, pl.cdiv(D, 128) * 128)
    per_row_bytes = T * lanes * jnp.dtype(dance_gt.dtype).itemsize
    tb = _pick_row_tile(bn, max_tile_bn, per_row_bytes, n_bufs=3,
                        min_tile=1, vmem_budget_bytes=vmem_budget_bytes)
    grid = (pl.cdiv(bn, tb),)

    out = pl.pallas_call(
        _make_dance_src_kernel(thr, seed),
        out_shape=jax.ShapeDtypeStruct((bn, T, D), dance_gt.dtype),
        grid_spec=pl.GridSpec(
            grid=grid,
            in_specs=[
                pl.BlockSpec((tb, T, D), lambda i: (i, 0, 0)),   # gt
                pl.BlockSpec((tb, T, D), lambda i: (i, 0, 0)),   # pred (padded)
            ],
            out_specs=pl.BlockSpec((tb, T, D), lambda i: (i, 0, 0)),
        ),
        compiler_params=pltpu.CompilerParams(
            dimension_semantics=("parallel",),   # counter-based PRNG -> order-free
        ),
    )(gt2, pr2)
    return out.reshape(b, n, T, D)


# ----------------------------------------------------------------------------
# Translatable slice of CycleDancers.forward (data prep + scheduled sampling).
# ----------------------------------------------------------------------------
def cycle_dancers_prepare(music_librosa, smpl_trans, smpl_poses,
                          cur_epoch, max_epoch, dance_pred_proxy=None, seed=0):
    b, n, t, _ = smpl_trans.shape
    music = music_librosa
    dance = make_dance(smpl_trans, smpl_poses)            # cat along feature dim
    mask = get_mask(t - 1)                                # self.mask[:t-1, :t-1]

    # TODO(synk): dance_pred would come from Music2Dance(music[:,1:], ...); the
    # submodule is undefined, so a deterministic proxy exercises the mixer kernel.
    if dance_pred_proxy is None:
        dance_pred_proxy = dance[:, :, 1:, :] * 0.5       # (b, n, t-1, D)

    dance_src = get_dance_src(
        dance[:, :, :-1, :],                              # dance_gt  (t-1 steps)
        dance_pred_proxy[:, :, :-1, :],                   # pred      (t-2 steps)
        cur_epoch, max_epoch, seed=seed,
    )
    return music, dance, mask, dance_src


if __name__ == "__main__":
    key = jax.random.PRNGKey(0)
    b, n, t = 2, 1, 8
    d_music, d_trans, d_pose = 35, 3, 132

    k0, k1, k2, k3, k4 = jax.random.split(key, 5)
    music_librosa = jax.random.normal(k0, (b, t, d_music), jnp.float32)
    music_mert = jax.random.normal(k1, (b, t, 64), jnp.float32)             # unused here
    smpl_trans = jax.random.normal(k2, (b, n, t, d_trans), jnp.float32)
    smpl_root_vel = jax.random.normal(k3, (b, n, t, d_trans), jnp.float32)  # unused
    smpl_poses = jax.random.normal(k4, (b, n, t, d_pose), jnp.float32)

    # epoch <= 300 -> p = 1.0 -> short-circuit: dance_src must equal dance_gt exactly
    music, dance, mask, dance_src = cycle_dancers_prepare(
        music_librosa, smpl_trans, smpl_poses, cur_epoch=100, max_epoch=1000)
    jax.block_until_ready((music, dance, mask, dance_src))

    # reference checks
    dance_ref = jnp.concatenate([smpl_trans, smpl_poses], axis=3)
    assert jnp.array_equal(dance, dance_ref), "feature-concat mismatch"

    row = jnp.arange(t - 1)[:, None]
    col = jnp.arange(t - 1)[None, :]
    mask_ref = jnp.where(col <= row, 0.0, -jnp.inf).astype(jnp.float32)
    assert jnp.array_equal(mask, mask_ref), "causal-mask mismatch"

    gt_win = dance_ref[:, :, :-1, :]
    assert jnp.array_equal(dance_src, gt_win), \
        "scheduled-sampling p=1.0 short-circuit mismatch"

    # epoch = 800 -> p = 0.5 -> exercises the Pallas mixer kernel + PRNG path
    _, _, _, dance_src2 = cycle_dancers_prepare(
        music_librosa, smpl_trans, smpl_poses, cur_epoch=800, max_epoch=1000, seed=1)
    jax.block_until_ready(dance_src2)

    pred_proxy = (dance_ref[:, :, 1:, :] * 0.5)[:, :, :-1, :]
    shifted_ref = jnp.concatenate([gt_win[:, :, :1, :], pred_proxy], axis=2)
    is_gt = dance_src2 == gt_win
    is_sh = dance_src2 == shifted_ref
    assert bool(jnp.all(is_gt | is_sh)), "mixer produced values outside {gt, shifted}"
    assert bool(jnp.all(dance_src2[:, :, :1, :] == gt_win[:, :, :1, :])), \
        "time-step-0 must equal gt"
    assert bool(jnp.any(~is_gt)), "p=0.5 path produced no mixing (PRNG degenerate)"

    print("KERNEL_OK")
</pallas_src>

<mosaic_0001>
module attributes {stable_mosaic.version = 11 : i64} {
  func.func @kernel(%arg0: i32, %arg1: memref<1x7x135xf32, #tpu.memory_space<vmem>>, %arg2: memref<1x7x135xf32, #tpu.memory_space<vmem>>, %arg3: memref<1x7x135xf32, #tpu.memory_space<vmem>>) attributes {dimension_semantics = [#tpu.dimension_semantics<parallel>], iteration_bounds = array<i64: 2>, scalar_prefetch = 0 : i64, scratch_operands = 0 : i64, tpu.core_type = #tpu.core_type<tc>, window_params = [{transform_indices = @transform_0, window_bounds = array<i64: 1, 7, 135>}, {transform_indices = @transform_1, window_bounds = array<i64: 1, 7, 135>}, {transform_indices = @transform_2, window_bounds = array<i64: 1, 7, 135>}]} {
    %0 = tpu.iota {dimensions = array<i32: 1>} : vector<1x7x135xi32>
    %1 = tpu.iota {dimensions = array<i32: 2>} : vector<1x7x135xi32>
    %c135_i32 = arith.constant 135 : i32
    %2 = vector.broadcast %c135_i32 : i32 to vector<1x7x135xi32>
    %3 = arith.muli %0, %2 : vector<1x7x135xi32>
    %4 = arith.addi %3, %1 : vector<1x7x135xi32>
    %c1_i32 = arith.constant 1 : i32
    %5 = arith.muli %arg0, %c1_i32 : i32
    %6 = tpu.iota {dimensions = array<i32: 0>} : vector<1x1x1xi32>
    %7 = vector.broadcast %5 : i32 to vector<1x1x1xi32>
    %8 = arith.addi %7, %6 : vector<1x1x1xi32>
    %c945_i32 = arith.constant 945 : i32
    %9 = vector.broadcast %c945_i32 : i32 to vector<1x1x1xi32>
    %10 = arith.muli %8, %9 : vector<1x1x1xi32>
    %11 = vector.broadcast %10 : vector<1x1x1xi32> to vector<1x7x135xi32>
    %12 = arith.addi %11, %4 : vector<1x7x135xi32>
    %c-1640531535_i32 = arith.constant -1640531535 : i32
    %13 = vector.broadcast %c-1640531535_i32 : i32 to vector<1x7x135xi32>
    %14 = arith.muli %12, %13 : vector<1x7x135xi32>
    %c1_i32_0 = arith.constant 1 : i32
    %15 = vector.broadcast %c1_i32_0 : i32 to vector<1x7x135xi32>
    %16 = arith.addi %14, %15 : vector<1x7x135xi32>
    %c16_i32 = arith.constant 16 : i32
    %17 = vector.broadcast %c16_i32 : i32 to vector<1x7x135xi32>
    %18 = arith.shrsi %16, %17 : vector<1x7x135xi32>
    %c65535_i32 = arith.constant 65535 : i32
    %19 = vector.broadcast %c65535_i32 : i32 to vector<1x7x135xi32>
    %20 = arith.andi %18, %19 : vector<1x7x135xi32>
    %21 = arith.xori %16, %20 : vector<1x7x135xi32>
    %c-2048144789_i32 = arith.constant -2048144789 : i32
    %22 = vector.broadcast %c-2048144789_i32 : i32 to vector<1x7x135xi32>
    %23 = arith.muli %21, %22 : vector<1x7x135xi32>
    %c15_i32 = arith.constant 15 : i32
    %24 = vector.broadcast %c15_i32 : i32 to vector<1x7x135xi32>
    %25 = arith.shrsi %23, %24 : vector<1x7x135xi32>
    %c131071_i32 = arith.constant 131071 : i32
    %26 = vector.broadcast %c131071_i32 : i32 to vector<1x7x135xi32>
    %27 = arith.andi %25, %26 : vector<1x7x135xi32>
    %28 = arith.xori %23, %27 : vector<1x7x135xi32>
    %c2147483647_i32 = arith.constant 2147483647 : i32
    %29 = vector.broadcast %c2147483647_i32 : i32 to vector<1x7x135xi32>
    %30 = arith.andi %28, %29 : vector<1x7x135xi32>
    %c1073741824_i32 = arith.constant 1073741824 : i32
    %31 = vector.broadcast %c1073741824_i32 : i32 to vector<1x7x135xi32>
    %32 = arith.cmpi sle, %30, %31 : vector<1x7x135xi32>
    %c0_i32 = arith.constant 0 : i32
    %33 = vector.broadcast %c0_i32 : i32 to vector<1x7x135xi32>
    %34 = arith.cmpi eq, %0, %33 : vector<1x7x135xi32>
    %35 = arith.ori %32, %34 : vector<1x7x135xi1>
    %c0 = arith.constant 0 : index
    %c0_1 = arith.constant 0 : index
    %c0_2 = arith.constant 0 : index
    %36 = vector.load %arg1[%c0, %c0_1, %c0_2] : memref<1x7x135xf32, #tpu.memory_space<vmem>>, vector<1x7x135xf32>
    %c0_3 = arith.constant 0 : index
    %c0_4 = arith.constant 0 : index
    %c0_5 = arith.constant 0 : index
    %37 = vector.load %arg2[%c0_3, %c0_4, %c0_5] : memref<1x7x135xf32, #tpu.memory_space<vmem>>, vector<1x7x135xf32>
    %38 = arith.select %35, %36, %37 : vector<1x7x135xi1>, vector<1x7x135xf32>
    %c0_6 = arith.constant 0 : index
    %c0_7 = arith.constant 0 : index
    %c0_8 = arith.constant 0 : index
    %39 = vector.load %arg3[%c0_6, %c0_7, %c0_8] : memref<1x7x135xf32, #tpu.memory_space<vmem>>, vector<1x7x135xf32>
    tpu.vector_store %arg3[%c0_6, %c0_7, %c0_8], %38 {strides = array<i32>} : memref<1x7x135xf32, #tpu.memory_space<vmem>>, vector<1x7x135xf32>,
    return
  }
  func.func @transform_0(%arg0: i32) -> (i32, i32, i32) {
    %c0_i32 = arith.constant 0 : i32
    %c0_i32_0 = arith.constant 0 : i32
    %c0_i32_1 = arith.constant 0 : i32
    return %arg0, %c0_i32, %c0_i32_0 : i32, i32, i32
  }
  func.func @transform_1(%arg0: i32) -> (i32, i32, i32) {
    %c0_i32 = arith.constant 0 : i32
    %c0_i32_0 = arith.constant 0 : i32
    %c0_i32_1 = arith.constant 0 : i32
    return %arg0, %c0_i32, %c0_i32_0 : i32, i32, i32
  }
  func.func @transform_2(%arg0: i32) -> (i32, i32, i32) {
    %c0_i32 = arith.constant 0 : i32
    %c0_i32_0 = arith.constant 0 : i32
    %c0_i32_1 = arith.constant 0 : i32
    return %arg0, %c0_i32, %c0_i32_0 : i32, i32, i32
  }
}

</mosaic_0001>

<llo_original>
// kernel: tpu_custom_call.1
$region0: #{tpu_custom_call.1}
  #allocation0 [shape = 'u32[]', space=smem, size = 0x4, offset = 0x4, fixed_abs, tag = 'smem constant byte address 0x4 - core index']
  #allocation1 [shape = 'u32[144,128]{1,0:T(1,128)}', space=vmem, size = 0x12000, scoped, tag = 'internal scratch']
  %s0 = inlined_call_operand.vmem [shape: f32[2,7,135], index: 0, kind: input, shape index: {}]
  %s1 = inlined_call_operand.vmem [shape: f32[2,7,135], index: 1, kind: input, shape index: {}]
  %s2 = inlined_call_operand.vmem [shape: f32[2,7,135], index: 2, kind: output, shape index: {}]
  %s3 = sld [smem:[#allocation0]]
  $region41: #{tpu_custom_call.1} parent=0
    _
  %s5 = ssub.s32 1, %s3
  %s6 = scalar_select 0, %s5, %s3
  loop: start=0, step=1, limit=4
  $region2: #{tpu_custom_call.1} parent=0 // loop_pre_header
    _
  $region3: #{tpu_custom_call.1} parent=0 // loop_header
    %s8 = sphi 0, %s12
    %p9 = scmp.ge.s32.totalorder %s8, 4
    %s18 = sphi 0, %s20
    %s21 = sphi 0, %s18
    %s22 = sphi 0, %s21
    %s38 = sphi 0, %s22
    %s44 = sphi 0, %s46
    %s47 = sphi 0, %s44
    %s48 = sphi 0, %s47
    %s64 = sphi 0, %s48
    %s70 = sphi 0, %s72
    %s73 = sphi 0, %s70
    %s74 = sphi 0, %s73
    %s90 = sphi 0, %s74
  $region4: #{tpu_custom_call.1} parent=0 // loop_header_branch
    %11 = sbr.rel (%p9) target = $region8
  $region5: #{tpu_custom_call.1} parent=0 // loop_body
    %s13 = ssub.s32 %s8, 1
    %s14 = ssub.s32 %s8, 2
    %s15 = sadd.s32 %s8, 1
    %s16 = ssub.s32 %s8, %s15
    %p17 = scmp.eq.s32.totalorder %s16, 0
    %s19 = sadd.s32 %s18, 1
    %s20 = scalar_select %p17, %s18, %s19
    %p23 = pneg %p17
    %p24 = scmp.eq.s32.totalorder %s8, 1
    %p25 = por %p23, %p24
    %p26 = scmp.ne.s32.totalorder %s18, %s21
    %p27 = scmp.eq.s32.totalorder %s8, 0
    %p28 = por %p26, %p27
    %p29 = scmp.ne.s32.totalorder %s18, %s21
    %p30 = scmp.eq.s32.totalorder %s13, 1
    %p31 = por %p29, %p30
    %p32 = scmp.ne.s32.totalorder %s21, %s22
    %p33 = scmp.eq.s32.totalorder %s13, 0
    %p34 = por %p32, %p33
    %p35 = scmp.ne.s32.totalorder %s21, %s22
    %p36 = scmp.eq.s32.totalorder %s14, 1
    %p37 = por %p35, %p36
    %p39 = scmp.ne.s32.totalorder %s22, %s38
    %p40 = scmp.eq.s32.totalorder %s14, 0
    %p41 = por %p39, %p40
    %s42 = ssub.s32 %s8, %s15
    %p43 = scmp.eq.s32.totalorder %s42, 0
    %s45 = sadd.s32 %s44, 1
    %s46 = scalar_select %p43, %s44, %s45
    %p49 = pneg %p43
    %p50 = scmp.eq.s32.totalorder %s8, 1
    %p51 = por %p49, %p50
    %p52 = scmp.ne.s32.totalorder %s44, %s47
    %p53 = scmp.eq.s32.totalorder %s8, 0
    %p54 = por %p52, %p53
    %p55 = scmp.ne.s32.totalorder %s44, %s47
    %p56 = scmp.eq.s32.totalorder %s13, 1
    %p57 = por %p55, %p56
    %p58 = scmp.ne.s32.totalorder %s47, %s48
    %p59 = scmp.eq.s32.totalorder %s13, 0
    %p60 = por %p58, %p59
    %p61 = scmp.ne.s32.totalorder %s47, %s48
    %p62 = scmp.eq.s32.totalorder %s14, 1
    %p63 = por %p61, %p62
    %p65 = scmp.ne.s32.totalorder %s48, %s64
    %p66 = scmp.eq.s32.totalorder %s14, 0
    %p67 = por %p65, %p66
    %s68 = ssub.s32 %s8, %s15
    %p69 = scmp.eq.s32.totalorder %s68, 0
    %s71 = sadd.s32 %s70, 1
    %s72 = scalar_select %p69, %s70, %s71
    %p75 = pneg %p69
    %p76 = scmp.eq.s32.totalorder %s8, 1
    %p77 = por %p75, %p76
    %p78 = scmp.ne.s32.totalorder %s70, %s73
    %p79 = scmp.eq.s32.totalorder %s8, 0
    %p80 = por %p78, %p79
    %p81 = scmp.ne.s32.totalorder %s70, %s73
    %p82 = scmp.eq.s32.totalorder %s13, 1
    %p83 = por %p81, %p82
    %p84 = scmp.ne.s32.totalorder %s73, %s74
    %p85 = scmp.eq.s32.totalorder %s13, 0
    %p86 = por %p84, %p85
    %p87 = scmp.ne.s32.totalorder %s73, %s74
    %p88 = scmp.eq.s32.totalorder %s14, 1
    %p89 = por %p87, %p88
    %p91 = scmp.ne.s32.totalorder %s74, %s90
    %p92 = scmp.eq.s32.totalorder %s14, 0
    %p93 = por %p91, %p92
    %p94 = scmp.le.s32.totalorder 1, %s8
    %p95 = scmp.lt.s32.totalorder %s8, 3
    %p96 = pnand %p94, %p95
    %p97 = pneg %p96
    // Predicated region
    $region9: #{tpu_custom_call.1} parent=5 // pred_check
      _
    $region10: #{tpu_custom_call.1} parent=5 // pred_check_branch
      %99 = sbr.rel (%p96) target = $region12
    $region11: #{tpu_custom_call.1} parent=5 // pred_region
      %s100 = ssub.s32 %s8, 1
    $region12: #{tpu_custom_call.1} parent=5 // pred_fallthru
      _
    %p101 = scmp.lt.s32.totalorder %s8, 2
    // Predicated region
    $region13: #{tpu_custom_call.1} parent=5 // pred_check
      %p102 = pneg %p101
    $region14: #{tpu_custom_call.1} parent=5 // pred_check_branch
      %104 = sbr.rel (%p102) target = $region16
    $region15: #{tpu_custom_call.1} parent=5 // pred_region
      // Predicated region
      $region17: #{tpu_custom_call.1} parent=15 // pred_check
        %p105 = pneg %p28
      $region18: #{tpu_custom_call.1} parent=15 // pred_check_branch
        %107 = sbr.rel (%p105) target = $region20
      $region19: #{tpu_custom_call.1} parent=15 // pred_region
        %p108 = scmp.lt.s32.totalorder %s8, 1
        %s109 = scalar_select %p108, %s8, 1
        %s110 = smul.addr %s109, 2
        %s111 = smul.addr %s110, 8
        %s112 = scalar_lea.vmem %s0, %s111
      $region20: #{tpu_custom_call.1} parent=15 // pred_fallthru
        _
      // Predicated region
      $region21: #{tpu_custom_call.1} parent=15 // pred_check
        %p113 = pneg %p54
      $region22: #{tpu_custom_call.1} parent=15 // pred_check_branch
        %115 = sbr.rel (%p113) target = $region24
      $region23: #{tpu_custom_call.1} parent=15 // pred_region
        %p116 = scmp.lt.s32.totalorder %s8, 1
        %s117 = scalar_select %p116, %s8, 1
        %s118 = smul.addr %s117, 2
        %s119 = smul.addr %s118, 8
        %s120 = scalar_lea.vmem %s1, %s119
      $region24: #{tpu_custom_call.1} parent=15 // pred_fallthru
        _
    $region16: #{tpu_custom_call.1} parent=5 // pred_fallthru
      _
    %p121 = scmp.le.s32.totalorder 1, %s8
    %p122 = scmp.lt.s32.totalorder %s8, 3
    %p123 = pnand %p121, %p122
    %p124 = pneg %p123
    // Predicated region
    $region25: #{tpu_custom_call.1} parent=5 // pred_check
      _
    $region26: #{tpu_custom_call.1} parent=5 // pred_check_branch
      %126 = sbr.rel (%p123) target = $region28
    $region27: #{tpu_custom_call.1} parent=5 // pred_region
      %s127 = ssub.s32 %s8, 1
      %p128 = scmp.lt.s32.totalorder %s13, 1
      %s129 = scalar_select %p128, %s13, 1
      %s130 = smul.addr %s129, 2
      %s131 = smul.addr %s130, 8
      %s132 = scalar_lea.vmem %s0, %s131
      %p133 = pneg %p34
      %p134 = pneg %p31
      %p135 = scmp.lt.s32.totalorder %s13, 1
      %s136 = scalar_select %p135, %s13, 1
      %s137 = smul.addr %s136, 2
      %s138 = smul.addr %s137, 8
      %s139 = scalar_lea.vmem %s1, %s138
      %p140 = pneg %p60
      %p141 = pneg %p57
      %p142 = pneg %p86
      %p143 = pneg %p83
      %p144 = scmp.lt.s32.totalorder %s13, 1
      %s145 = scalar_select %p144, %s13, 1
      %s146 = smul.addr %s145, 2
      %s147 = smul.addr %s146, 8
      %s148 = scalar_lea.vmem %s2, %s147
      %p149 = scmp.lt.s32.totalorder %s13, 1
      %s150 = scalar_select %p149, %s13, 1
      %s151 = smul.addr %s150, 2
      %s152 = smul.addr %s151, 8
      %s153 = scalar_lea.vmem %s0, %s152
      %p154 = scmp.lt.s32.totalorder %s13, 1
      %s155 = scalar_select %p154, %s13, 1
      %s156 = smul.addr %s155, 2
      %s157 = smul.addr %s156, 8
      %s158 = scalar_lea.vmem %s1, %s157
      %p159 = scmp.lt.s32.totalorder %s13, 1
      %s160 = scalar_select %p159, %s13, 1
      %s161 = smul.addr %s160, 2
      %s162 = smul.addr %s161, 8
      %s163 = scalar_lea.vmem %s2, %s162
      %v164 = vlaneseq
      %v165 = vshrl.u32 %v164, 7
      %v166 = vlaneseq
      %v167 = vand.u32 %v166, 127
      %v168 = vadd.s32 %v167, 128
      %v169 = vmul.u32 %v165, 135
      %v170 = vadd.s32 %v169, %v167
      %v171 = vadd.s32 %v169, %v168
      %v172 = vstv %s13
      %v173 = vmul.u32 %v172, 945
      %v174 = vadd.s32 %v173, %v170
      %v175 = vadd.s32 %v173, %v171
      %v176 = vmul.u32 %v174, 2654435761
      %v177 = vmul.u32 %v175, 2654435761
      %v178 = vadd.s32 %v176, 1
      %v179 = vadd.s32 %v177, 1
      %v180 = vshra.s32 %v178, 16
      %v181 = vshra.s32 %v179, 16
      %v182 = vand.u32 %v180, 65535
      %v183 = vand.u32 %v181, 65535
      %v184 = vxor.u32 %v178, %v182
      %v185 = vxor.u32 %v179, %v183
      %v186 = vmul.u32 %v184, 2246822507
      %v187 = vmul.u32 %v185, 2246822507
      %v188 = vshra.s32 %v186, 15
      %v189 = vshra.s32 %v187, 15
      %v190 = vand.u32 %v188, 131071
      %v191 = vand.u32 %v189, 131071
      %v192 = vxor.u32 %v186, %v190
      %v193 = vxor.u32 %v187, %v191
      %v194 = vand.u32 %v192, 2147483647
      %v195 = vand.u32 %v193, 2147483647
      %vm196 = vcmp.le.s32.totalorder %v194, 1073741824
      %vm197 = vcmp.le.s32.totalorder %v195, 1073741824
      %vm198 = vcmp.eq.s32.totalorder %v165, 0
      %vm199 = vmor %vm196, %vm198
      %vm200 = vmor %vm197, %vm198
      %v201 = vld [vmem:[%s153] sm:$0x7f]
      %v202 = vld [vmem:[%s153 + $0x8] sm:$0x7f]
      %v203 = vld [vmem:[%s158] sm:$0x7f]
      %v204 = vld [vmem:[%s158 + $0x8] sm:$0x7f]
      %v205 = vsel %vm199, %v201, %v203
      %v206 = vsel %vm200, %v202, %v204
      %207 = vst [vmem:[%s163] sm:$0x7f] %v205
      %vm208 = vcmask 55296
      %209 = vst.msk [vmem:[%s163 + $0x8] sm:$0x7f] %vm208, %v206
      %p210 = scmp.lt.s32.totalorder %s13, 1
      %s211 = scalar_select %p210, %s13, 1
      %s212 = smul.addr %s211, 2
      %s213 = smul.addr %s212, 8
      %s214 = scalar_lea.vmem %s2, %s213
      // Predicated region
      $region29: #{tpu_custom_call.1} parent=27 // pred_check
        %p215 = pneg %p83
      $region30: #{tpu_custom_call.1} parent=27 // pred_check_branch
        %217 = sbr.rel (%p215) target = $region32
      $region31: #{tpu_custom_call.1} parent=27 // pred_region
        _
      $region32: #{tpu_custom_call.1} parent=27 // pred_fallthru
        _
    $region28: #{tpu_custom_call.1} parent=5 // pred_fallthru
      _
    %p218 = scmp.le.s32.totalorder 2, %s8
    // Predicated region
    $region33: #{tpu_custom_call.1} parent=5 // pred_check
      %p219 = pneg %p218
    $region34: #{tpu_custom_call.1} parent=5 // pred_check_branch
      %221 = sbr.rel (%p219) target = $region36
    $region35: #{tpu_custom_call.1} parent=5 // pred_region
      %s222 = ssub.s32 %s8, 2
      // Predicated region
      $region37: #{tpu_custom_call.1} parent=35 // pred_check
        %p223 = pneg %p89
      $region38: #{tpu_custom_call.1} parent=35 // pred_check_branch
        %225 = sbr.rel (%p223) target = $region40
      $region39: #{tpu_custom_call.1} parent=35 // pred_region
        %p226 = scmp.lt.s32.totalorder %s14, 1
        %s227 = scalar_select %p226, %s14, 1
        %s228 = smul.addr %s227, 2
        %s229 = smul.addr %s228, 8
        %s230 = scalar_lea.vmem %s2, %s229
      $region40: #{tpu_custom_call.1} parent=35 // pred_fallthru
        _
    $region36: #{tpu_custom_call.1} parent=5 // pred_fallthru
      _
  $region6: #{tpu_custom_call.1} parent=0 // loop_footer
    %s12 = sadd.s32 1, %s8
  $region7: #{tpu_custom_call.1} parent=0 // loop_footer_branch
    %7 = sbr.rel target = $region3
  $region8: #{tpu_custom_call.1} parent=0 // loop_exit
    _

</llo_original>
